<compile_context>
chip_gen: v7x
topology: tpu7x:2x2x1
jax: 0.10.0
libtpu: 0.0.40
codegen_flags: <defaults>
</compile_context>

<pallas_src>
import functools
import math

import jax
import jax.numpy as jnp
from jax import lax
from jax.experimental import pallas as pl
from jax.experimental.pallas import tpu as pltpu

_INT32_MIN = -2147483648  # packed-key sentinel: loses to every real candidate


def _l2norm_bf16_kernel(x_ref, xn_ref):
    """Row-wise L2 normalization in f32, cast to bf16 for the MXU Gram stage."""
    x = x_ref[...].astype(jnp.float32)
    inv = lax.rsqrt(jnp.sum(x * x, axis=-1, keepdims=True) + 1e-12)
    xn_ref[...] = (x * inv).astype(jnp.bfloat16)


def _fused_knn_kernel(qn_ref, kn_ref, lbl_ref, preds_ref, topk_ref, *,
                      k, num_classes, n_valid, cls_bits, rows_per_chunk,
                      keys_resident):
    """Fused similarity-panel + online top-k merge (chunked) + deferred majority vote.

    Grid = (row_panels, key_panels); key_panels is the online ("arbitrary") axis.
    topk_ref (tm, kpad) int32 holds the running top-k packed keys per query row.
    Packed key = order-preserving(similarity bits) with the low `cls_bits` bits
    replaced by the neighbor's class id, so one cross-lane max both ranks and labels
    the winner.  Each grid step processes the panel in `rows_per_chunk`-row chunks so
    live vreg state stays small (no spilling).
    """
    tm = qn_ref.shape[0]
    tn = lbl_ref.shape[1]
    kpad = topk_ref.shape[1]
    rc = rows_per_chunk
    cls_mask = (1 << cls_bits) - 1
    j = pl.program_id(1)

    @pl.when(j == 0)
    def _init():
        topk_ref[...] = jnp.full(topk_ref.shape, _INT32_MIN, jnp.int32)

    # Panel-wide (tiny) constants, shared by all row chunks.
    colg = j * tn + lax.broadcasted_iota(jnp.int32, (1, tn), 1)       # global col idx
    lbl = lbl_ref[...] & cls_mask                                     # (1, tn)
    kcol = lax.broadcasted_iota(jnp.int32, (1, kpad), 1)              # (1, kpad)

    def merge_chunk(c, _):
        r0 = pl.multiple_of(c * rc, rc)
        q = qn_ref[pl.ds(r0, rc), :]                                  # (rc, d) bf16
        if keys_resident:
            kpanel = kn_ref[pl.ds(pl.multiple_of(j * tn, tn), tn), :]
        else:
            kpanel = kn_ref[...]
        # similarity sub-panel on the MXU: bf16 inputs, f32 accumulate, transpose-free
        sim = lax.dot_general(q, kpanel,
                              dimension_numbers=(((1,), (1,)), ((), ())),
                              preferred_element_type=jnp.float32)     # (rc, tn)
        # padded key columns get a finite sentinel below the cosine range [-1, 1]
        sim = jnp.where(colg < n_valid, sim, -2.0)

        # pack (similarity, class) into one order-preserving int32 key
        iv = pltpu.bitcast(sim, jnp.int32)
        key = jnp.where(iv < 0, jnp.int32(_INT32_MIN) - iv, iv)       # monotonic in sim
        packed = (key & jnp.int32(~cls_mask)) | lbl                   # class in low bits

        # merge new candidates with the running top-k (no VMEM round trip)
        cand0 = jnp.concatenate([topk_ref[pl.ds(r0, rc), :], packed], axis=-1)

        def extract(t, carry):
            cand, topk = carry
            best = jnp.max(cand, axis=-1, keepdims=True)              # (rc, 1)
            topk = jnp.where(kcol == t, best, topk)
            cand = jnp.where(cand == best, jnp.int32(_INT32_MIN), cand)
            return cand, topk

        _, topk = lax.fori_loop(
            0, k, extract,
            (cand0, jnp.full((rc, kpad), _INT32_MIN, jnp.int32)),
            unroll=2)
        topk_ref[pl.ds(r0, rc), :] = topk
        return 0

    lax.fori_loop(0, tm // rc, merge_chunk, 0)

    # Deferred voting: only on the last key panel, from the final top-k keys.
    @pl.when(j == pl.num_programs(1) - 1)
    def _finish():
        def vote_chunk(c, _):
            r0 = pl.multiple_of(c * rc, rc)
            tk = topk_ref[pl.ds(r0, rc), :]                           # (rc, kpad)
            # lanes >= k are unused sentinels -> give them an out-of-range class
            cls_ids = jnp.where(kcol < k, tk & cls_mask, num_classes)

            def vote(cc, carry):
                bcnt, bcls = carry
                cnt = jnp.sum((cls_ids == cc).astype(jnp.int32),
                              axis=-1, keepdims=True)                 # (rc, 1)
                better = cnt > bcnt                                   # ties -> lowest class
                return (jnp.where(better, cnt, bcnt),
                        jnp.where(better, cc, bcls))

            _, bcls = lax.fori_loop(0, num_classes, vote,
                                    (jnp.full((rc, 1), -1, jnp.int32),
                                     jnp.zeros((rc, 1), jnp.int32)))
            preds_ref[pl.ds(r0, rc), :] = bcls
            return 0

        lax.fori_loop(0, tm // rc, vote_chunk, 0)


def _metrics_kernel(pred_ref, tgt_ref, conf_ref, acc_ref, kappa_ref, *,
                    n_valid, num_classes):
    """Confusion matrix (MXU, one-hots built in-kernel), accuracy and Cohen's kappa."""
    i = pl.program_id(0)

    @pl.when(i == 0)
    def _init():
        conf_ref[...] = jnp.zeros_like(conf_ref)

    p = pred_ref[...]                                         # (tc, 1) int32
    y = tgt_ref[...]                                          # (tc, 1) int32, pad rows = -1
    ccol = lax.broadcasted_iota(jnp.int32, (p.shape[0], num_classes), 1)
    ohp = (p == ccol).astype(jnp.float32)                     # predicted one-hot
    ohy = (y == ccol).astype(jnp.float32)                     # target one-hot (pad -> 0 row)
    conf_ref[...] += jnp.einsum("np,nt->pt", ohp, ohy,
                                preferred_element_type=jnp.float32)

    @pl.when(i == pl.num_programs(0) - 1)
    def _finish():
        conf = conf_ref[...]
        nf = jnp.float32(n_valid)
        eye = (lax.broadcasted_iota(jnp.int32, conf.shape, 0)
               == lax.broadcasted_iota(jnp.int32, conf.shape, 1)).astype(jnp.float32)
        po = jnp.sum(conf * eye, axis=0, keepdims=True).sum(axis=1, keepdims=True) / nf
        rowm = jnp.sum(conf, axis=1, keepdims=True)            # (C, 1) pred marginals
        colm = jnp.sum(conf, axis=0, keepdims=True)            # (1, C) target marginals
        # pe = sum_c rowm[c] * colm[c] / N^2  (diagonal of the marginal outer product)
        pe = jnp.sum(rowm * colm * eye, axis=0, keepdims=True).sum(
            axis=1, keepdims=True) / (nf * nf)
        denom = 1.0 - pe
        kappa = jnp.where(jnp.abs(denom) <= 1e-12, 0.0, (po - pe) / denom)
        acc_ref[...] = po
        kappa_ref[...] = kappa


def dino_metric_forward(embeddings, targets, num_classes, *, tm=256, tn=512,
                        rows_per_chunk=32, keys_resident=None):
    """JAX/Pallas equivalent of DINOMetric.forward (umap figure excluded)."""
    n, d = embeddings.shape
    k = num_classes                                  # classifier k = len(class_names)
    cls_bits = max(1, (num_classes - 1).bit_length())
    kpad = pl.cdiv(max(k, 1), 128) * 128             # 128-aligned running-top-k region

    t1 = 512                                         # pass-1 row tile (mem-bound pass)
    t3 = 512                                         # pass-3 row tile
    assert tm % rows_per_chunk == 0 and tm % 8 == 0 and tn % 128 == 0
    lcm = math.lcm(tm, tn, t1, t3)
    n_pad = pl.cdiv(n, lcm) * lcm
    d_pad = pl.cdiv(d, 128) * 128                    # fill MXU lanes; zero cols are free

    emb_p = jnp.zeros((n_pad, d_pad), embeddings.dtype).at[:n, :d].set(embeddings)
    tgt = targets.astype(jnp.int32)
    lbl_row = jnp.zeros((1, n_pad), jnp.int32).at[0, :n].set(tgt)     # pass-2 labels
    tgt_col = jnp.full((n_pad, 1), -1, jnp.int32).at[:n, 0].set(tgt)  # pass-3 targets

    # Pass 1: L2-normalize rows + bf16 cast.
    xn = pl.pallas_call(
        _l2norm_bf16_kernel,
        grid=(n_pad // t1,),
        in_specs=[pl.BlockSpec((t1, d_pad), lambda i: (i, 0))],
        out_specs=pl.BlockSpec((t1, d_pad), lambda i: (i, 0)),
        out_shape=jax.ShapeDtypeStruct((n_pad, d_pad), jnp.bfloat16),
        compiler_params=pltpu.CompilerParams(dimension_semantics=("parallel",)),
    )(emb_p)

    # Pass 2: fused similarity-panel + online top-k vote (Gram matrix never hits HBM).
    if keys_resident is None:
        # Keep the whole bf16 key matrix VMEM-resident when small enough for every
        # chip generation (v7x has only 64 MiB VMEM/TC); else stream key panels.
        keys_resident = (n_pad * d_pad * 2) <= (12 * 1024 * 1024)
    if keys_resident:
        kn_spec = pl.BlockSpec((n_pad, d_pad), lambda i, j: (0, 0))
        vmem_limit = 40 * 1024 * 1024
    else:
        kn_spec = pl.BlockSpec((tn, d_pad), lambda i, j: (j, 0))
        vmem_limit = 32 * 1024 * 1024

    fused = functools.partial(
        _fused_knn_kernel, k=k, num_classes=num_classes, n_valid=n,
        cls_bits=cls_bits, rows_per_chunk=rows_per_chunk,
        keys_resident=keys_resident)
    preds_col = pl.pallas_call(
        fused,
        grid=(n_pad // tm, n_pad // tn),
        in_specs=[pl.BlockSpec((tm, d_pad), lambda i, j: (i, 0)),     # query panel
                  kn_spec,                                            # key panel / full keys
                  pl.BlockSpec((1, tn), lambda i, j: (0, j))],        # key-panel labels
        out_specs=pl.BlockSpec((tm, 1), lambda i, j: (i, 0)),
        out_shape=jax.ShapeDtypeStruct((n_pad, 1), jnp.int32),
        scratch_shapes=[pltpu.VMEM((tm, kpad), jnp.int32)],
        compiler_params=pltpu.CompilerParams(
            dimension_semantics=("parallel", "arbitrary"),
            vmem_limit_bytes=vmem_limit),
    )(xn, xn, lbl_row)

    # Pass 3: confusion matrix + accuracy + Cohen's kappa (one-hots built in-kernel).
    metrics = functools.partial(_metrics_kernel, n_valid=n, num_classes=num_classes)
    conf, acc, kappa = pl.pallas_call(
        metrics,
        grid=(n_pad // t3,),
        in_specs=[pl.BlockSpec((t3, 1), lambda i: (i, 0)),
                  pl.BlockSpec((t3, 1), lambda i: (i, 0))],
        out_specs=(pl.BlockSpec((num_classes, num_classes), lambda i: (0, 0)),
                   pl.BlockSpec((1, 1), lambda i: (0, 0)),
                   pl.BlockSpec((1, 1), lambda i: (0, 0))),
        out_shape=(jax.ShapeDtypeStruct((num_classes, num_classes), jnp.float32),
                   jax.ShapeDtypeStruct((1, 1), jnp.float32),
                   jax.ShapeDtypeStruct((1, 1), jnp.float32)),
        compiler_params=pltpu.CompilerParams(dimension_semantics=("arbitrary",)),
    )(preds_col, tgt_col)

    # TODO(synk): self.umap(...) renders a matplotlib UMAP figure; no Pallas equivalent.
    return dict(umap=None,
                acc=acc[0, 0],
                kappa=kappa[0, 0],
                preds=preds_col[:n, 0],
                confusion=conf)


if __name__ == "__main__":
    key = jax.random.PRNGKey(0)
    class_names = ["a", "b", "c", "d"]
    C = len(class_names)
    N, D = 300, 96  # pads to n_pad=512, d_pad=128

    k_centers, k_targets, k_noise = jax.random.split(key, 3)
    targets = jax.random.randint(k_targets, (N,), 0, C, dtype=jnp.int32)
    centers = 3.0 * jax.random.normal(k_centers, (C, D), dtype=jnp.float32)
    embeddings = centers[targets] + jax.random.normal(k_noise, (N, D), dtype=jnp.float32)

    out = dino_metric_forward(embeddings, targets, C)
    jax.block_until_ready(out)

    preds = out["preds"]
    conf = out["confusion"]
    acc = float(out["acc"])
    kappa = float(out["kappa"])

    # Self-consistency checks (exact, independent of bf16 MXU rounding).
    assert conf.shape == (C, C) and abs(float(conf.sum()) - N) < 1e-3
    acc_check = float(jnp.mean((preds == targets).astype(jnp.float32)))
    assert abs(acc - acc_check) < 1e-5
    ref_conf = jnp.zeros((C, C), jnp.float32).at[preds, targets].add(1.0)
    assert bool(jnp.all(jnp.abs(conf - ref_conf) < 1e-3))
    po_r = float(jnp.trace(ref_conf)) / N
    pe_r = float(ref_conf.sum(1) @ ref_conf.sum(0)) / (N * N)
    kappa_r = 0.0 if (1.0 - pe_r) <= 1e-12 else (po_r - pe_r) / (1.0 - pe_r)
    assert abs(kappa - kappa_r) < 1e-4, (kappa, kappa_r)
    assert 0.0 <= acc <= 1.0 and -1.0 - 1e-5 <= kappa <= 1.0 + 1e-5

    # Agreement with a pure-JAX f32 cosine kNN reference (bf16 may flip rare near-ties).
    xn = embeddings / jnp.linalg.norm(embeddings, axis=1, keepdims=True)
    sim_ref = xn @ xn.T
    nbr = jax.lax.top_k(sim_ref, C)[1]
    votes_ref = jnp.sum(targets[nbr][..., None] == jnp.arange(C)[None, None, :], axis=1)
    ref_preds = jnp.argmax(votes_ref, axis=1)
    agreement = float(jnp.mean((preds == ref_preds).astype(jnp.float32)))
    assert agreement >= 0.9, agreement

    # Also exercise the streamed-key-panel path (multi key-panel online merge).
    out2 = dino_metric_forward(embeddings, targets, C, tm=128, tn=128,
                               keys_resident=False)
    jax.block_until_ready(out2)
    cross = float(jnp.mean((out2["preds"] == preds).astype(jnp.float32)))
    assert cross >= 0.99, cross

    print("KERNEL_OK")
</pallas_src>

<mosaic_0001>
module attributes {stable_mosaic.version = 11 : i64} {
  func.func @_l2norm_bf16_kernel(%arg0: i32, %arg1: memref<512x128xf32, #tpu.memory_space<vmem>>, %arg2: memref<512x128xbf16, #tpu.memory_space<vmem>>) attributes {dimension_semantics = [#tpu.dimension_semantics<parallel>], iteration_bounds = array<i64: 1>, scalar_prefetch = 0 : i64, scratch_operands = 0 : i64, tpu.core_type = #tpu.core_type<tc>, window_params = [{transform_indices = @transform_0, window_bounds = array<i64: 512, 128>}, {transform_indices = @transform_1, window_bounds = array<i64: 512, 128>}]} {
    %c0 = arith.constant 0 : index
    %c0_0 = arith.constant 0 : index
    %0 = vector.load %arg1[%c0, %c0_0] : memref<512x128xf32, #tpu.memory_space<vmem>>, vector<512x128xf32>
    %1 = arith.mulf %0, %0 : vector<512x128xf32>
    %cst = arith.constant dense<0.000000e+00> : vector<512xf32>
    %2 = vector.multi_reduction <add>, %1, %cst [1] : vector<512x128xf32> to vector<512xf32>
    %3 = vector.shape_cast %2 : vector<512xf32> to vector<512x1xf32>
    %cst_1 = arith.constant 9.99999996E-13 : f32
    %4 = vector.broadcast %cst_1 : f32 to vector<512x1xf32>
    %5 = arith.addf %3, %4 : vector<512x1xf32>
    %6 = math.rsqrt %5 : vector<512x1xf32>
    %7 = vector.broadcast %6 : vector<512x1xf32> to vector<512x128xf32>
    %8 = arith.mulf %0, %7 : vector<512x128xf32>
    %9 = arith.truncf %8 : vector<512x128xf32> to vector<512x128xbf16>
    %c0_2 = arith.constant 0 : index
    %c0_3 = arith.constant 0 : index
    %10 = vector.load %arg2[%c0_2, %c0_3] : memref<512x128xbf16, #tpu.memory_space<vmem>>, vector<512x128xbf16>
    tpu.vector_store %arg2[%c0_2, %c0_3], %9 {strides = array<i32>} : memref<512x128xbf16, #tpu.memory_space<vmem>>, vector<512x128xbf16>,
    return
  }
  func.func @transform_0(%arg0: i32) -> (i32, i32) {
    %c0_i32 = arith.constant 0 : i32
    %c0_i32_0 = arith.constant 0 : i32
    return %arg0, %c0_i32 : i32, i32
  }
  func.func @transform_1(%arg0: i32) -> (i32, i32) {
    %c0_i32 = arith.constant 0 : i32
    %c0_i32_0 = arith.constant 0 : i32
    return %arg0, %c0_i32 : i32, i32
  }
}

</mosaic_0001>

<llo_original>
// kernel: tpu_custom_call.1
$region0: #{tpu_custom_call.1}
  #allocation0 [shape = 'u32[]', space=smem, size = 0x4, offset = 0x4, fixed_abs, tag = 'smem constant byte address 0x4 - core index']
  #allocation1 [shape = 'u32[144,128]{1,0:T(1,128)}', space=vmem, size = 0x12000, scoped, tag = 'internal scratch']
  %s0 = inlined_call_operand.hbm [shape: f32[512,128], index: 0, kind: input, shape index: {}]
  %s1 = inlined_call_operand.hbm [shape: bf16[512,128], index: 1, kind: output, shape index: {}]
  %s2 = sld [smem:[#allocation0]]
  $region18: #{tpu_custom_call.1} parent=0
    _
  %s4 = ssub.s32 1, %s2
  %s5 = scalar_select 0, %s4, %s2
  $region1: #{tpu_custom_call.1} parent=0
    #allocation2 [shape = 'u8[262144]{0}', space=vmem, size = 0x40000, scoped, tag = 'input window, operand 0, single buffered']
    #allocation3 [shape = 's32[1]{0}', space=sflag, size = 0x4, scoped, tag = 'scoped memory for tpu_custom_call.1']
    #allocation4 [shape = 's32[1]{0}', space=sflag, size = 0x4, scoped, tag = 'scoped memory for tpu_custom_call.1']
    #allocation5 [shape = 'u8[131072]{0}', space=vmem, size = 0x20000, scoped, tag = 'output window, operand 0, single buffered']
    %6 = vsyncpa [#allocation3], 0
    %7 = vsyncpa [#allocation4], 0
    // Predicated region
    $region2: #{tpu_custom_call.1} parent=1 // pred_check
      _
    $region3: #{tpu_custom_call.1} parent=1 // pred_check_branch
      %9 = sbr.rel (0) target = $region5
    $region4: #{tpu_custom_call.1} parent=1 // pred_region
      %s11 = ssub.s32 8192, 8192
      %12 = vsyncadd [#allocation3], %s11
      %s13 = sshll.u32 [#allocation2], 4
      %s14 = int_to_ptr.vmem [resolvable:$true] %s13
      %19 = dma.hbm_to_vmem [thread:$0]  %s0, 8192, %s14, [#allocation3], 128, 128, 8
    $region5: #{tpu_custom_call.1} parent=1 // pred_fallthru
      _
    // Predicated region
    $region6: #{tpu_custom_call.1} parent=1 // pred_check
      _
    $region7: #{tpu_custom_call.1} parent=1 // pred_check_branch
      %21 = sbr.rel (0) target = $region9
    $region8: #{tpu_custom_call.1} parent=1 // pred_region
      %22 = dma.done [#allocation3], 8192
    $region9: #{tpu_custom_call.1} parent=1 // pred_fallthru
      _
    %v23 = vld [vmem:[#allocation2] sm:$0xff]
    %v24 = vld [vmem:[#allocation2 + $0x8] sm:$0xff]
    %v25 = vld [vmem:[#allocation2 + $0x10] sm:$0xff]
    %v26 = vld [vmem:[#allocation2 + $0x18] sm:$0xff]
    %v27 = vld [vmem:[#allocation2 + $0x20] sm:$0xff]
    %v28 = vld [vmem:[#allocation2 + $0x28] sm:$0xff]
    %v29 = vld [vmem:[#allocation2 + $0x30] sm:$0xff]
    %v30 = vld [vmem:[#allocation2 + $0x38] sm:$0xff]
    %v31 = vld [vmem:[#allocation2 + $0x40] sm:$0xff]
    %v32 = vld [vmem:[#allocation2 + $0x48] sm:$0xff]
    %v33 = vld [vmem:[#allocation2 + $0x50] sm:$0xff]
    %v34 = vld [vmem:[#allocation2 + $0x58] sm:$0xff]
    %v35 = vld [vmem:[#allocation2 + $0x60] sm:$0xff]
    %v36 = vld [vmem:[#allocation2 + $0x68] sm:$0xff]
    %v37 = vld [vmem:[#allocation2 + $0x70] sm:$0xff]
    %v38 = vld [vmem:[#allocation2 + $0x78] sm:$0xff]
    %v39 = vld [vmem:[#allocation2 + $0x80] sm:$0xff]
    %v40 = vld [vmem:[#allocation2 + $0x88] sm:$0xff]
    %v41 = vld [vmem:[#allocation2 + $0x90] sm:$0xff]
    %v42 = vld [vmem:[#allocation2 + $0x98] sm:$0xff]
    %v43 = vld [vmem:[#allocation2 + $0xa0] sm:$0xff]
    %v44 = vld [vmem:[#allocation2 + $0xa8] sm:$0xff]
    %v45 = vld [vmem:[#allocation2 + $0xb0] sm:$0xff]
    %v46 = vld [vmem:[#allocation2 + $0xb8] sm:$0xff]
    %v47 = vld [vmem:[#allocation2 + $0xc0] sm:$0xff]
    %v48 = vld [vmem:[#allocation2 + $0xc8] sm:$0xff]
    %v49 = vld [vmem:[#allocation2 + $0xd0] sm:$0xff]
    %v50 = vld [vmem:[#allocation2 + $0xd8] sm:$0xff]
    %v51 = vld [vmem:[#allocation2 + $0xe0] sm:$0xff]
    %v52 = vld [vmem:[#allocation2 + $0xe8] sm:$0xff]
    %v53 = vld [vmem:[#allocation2 + $0xf0] sm:$0xff]
    %v54 = vld [vmem:[#allocation2 + $0xf8] sm:$0xff]
    %v55 = vld [vmem:[#allocation2 + $0x100] sm:$0xff]
    %v56 = vld [vmem:[#allocation2 + $0x108] sm:$0xff]
    %v57 = vld [vmem:[#allocation2 + $0x110] sm:$0xff]
    %v58 = vld [vmem:[#allocation2 + $0x118] sm:$0xff]
    %v59 = vld [vmem:[#allocation2 + $0x120] sm:$0xff]
    %v60 = vld [vmem:[#allocation2 + $0x128] sm:$0xff]
    %v61 = vld [vmem:[#allocation2 + $0x130] sm:$0xff]
    %v62 = vld [vmem:[#allocation2 + $0x138] sm:$0xff]
    %v63 = vld [vmem:[#allocation2 + $0x140] sm:$0xff]
    %v64 = vld [vmem:[#allocation2 + $0x148] sm:$0xff]
    %v65 = vld [vmem:[#allocation2 + $0x150] sm:$0xff]
    %v66 = vld [vmem:[#allocation2 + $0x158] sm:$0xff]
    %v67 = vld [vmem:[#allocation2 + $0x160] sm:$0xff]
    %v68 = vld [vmem:[#allocation2 + $0x168] sm:$0xff]
    %v69 = vld [vmem:[#allocation2 + $0x170] sm:$0xff]
    %v70 = vld [vmem:[#allocation2 + $0x178] sm:$0xff]
    %v71 = vld [vmem:[#allocation2 + $0x180] sm:$0xff]
    %v72 = vld [vmem:[#allocation2 + $0x188] sm:$0xff]
    %v73 = vld [vmem:[#allocation2 + $0x190] sm:$0xff]
    %v74 = vld [vmem:[#allocation2 + $0x198] sm:$0xff]
    %v75 = vld [vmem:[#allocation2 + $0x1a0] sm:$0xff]
    %v76 = vld [vmem:[#allocation2 + $0x1a8] sm:$0xff]
    %v77 = vld [vmem:[#allocation2 + $0x1b0] sm:$0xff]
    %v78 = vld [vmem:[#allocation2 + $0x1b8] sm:$0xff]
    %v79 = vld [vmem:[#allocation2 + $0x1c0] sm:$0xff]
    %v80 = vld [vmem:[#allocation2 + $0x1c8] sm:$0xff]
    %v81 = vld [vmem:[#allocation2 + $0x1d0] sm:$0xff]
    %v82 = vld [vmem:[#allocation2 + $0x1d8] sm:$0xff]
    %v83 = vld [vmem:[#allocation2 + $0x1e0] sm:$0xff]
    %v84 = vld [vmem:[#allocation2 + $0x1e8] sm:$0xff]
    %v85 = vld [vmem:[#allocation2 + $0x1f0] sm:$0xff]
    %v86 = vld [vmem:[#allocation2 + $0x1f8] sm:$0xff]
    %v87 = vmul.f32 %v23, %v23
    %v88 = vmul.f32 %v24, %v24
    %v89 = vmul.f32 %v25, %v25
    %v90 = vmul.f32 %v26, %v26
    %v91 = vmul.f32 %v27, %v27
    %v92 = vmul.f32 %v28, %v28
    %v93 = vmul.f32 %v29, %v29
    %v94 = vmul.f32 %v30, %v30
    %v95 = vmul.f32 %v31, %v31
    %v96 = vmul.f32 %v32, %v32
    %v97 = vmul.f32 %v33, %v33
    %v98 = vmul.f32 %v34, %v34
    %v99 = vmul.f32 %v35, %v35
    %v100 = vmul.f32 %v36, %v36
    %v101 = vmul.f32 %v37, %v37
    %v102 = vmul.f32 %v38, %v38
    %v103 = vmul.f32 %v39, %v39
    %v104 = vmul.f32 %v40, %v40
    %v105 = vmul.f32 %v41, %v41
    %v106 = vmul.f32 %v42, %v42
    %v107 = vmul.f32 %v43, %v43
    %v108 = vmul.f32 %v44, %v44
    %v109 = vmul.f32 %v45, %v45
    %v110 = vmul.f32 %v46, %v46
    %v111 = vmul.f32 %v47, %v47
    %v112 = vmul.f32 %v48, %v48
    %v113 = vmul.f32 %v49, %v49
    %v114 = vmul.f32 %v50, %v50
    %v115 = vmul.f32 %v51, %v51
    %v116 = vmul.f32 %v52, %v52
    %v117 = vmul.f32 %v53, %v53
    %v118 = vmul.f32 %v54, %v54
    %v119 = vmul.f32 %v55, %v55
    %v120 = vmul.f32 %v56, %v56
    %v121 = vmul.f32 %v57, %v57
    %v122 = vmul.f32 %v58, %v58
    %v123 = vmul.f32 %v59, %v59
    %v124 = vmul.f32 %v60, %v60
    %v125 = vmul.f32 %v61, %v61
    %v126 = vmul.f32 %v62, %v62
    %v127 = vmul.f32 %v63, %v63
    %v128 = vmul.f32 %v64, %v64
    %v129 = vmul.f32 %v65, %v65
    %v130 = vmul.f32 %v66, %v66
    %v131 = vmul.f32 %v67, %v67
    %v132 = vmul.f32 %v68, %v68
    %v133 = vmul.f32 %v69, %v69
    %v134 = vmul.f32 %v70, %v70
    %v135 = vmul.f32 %v71, %v71
    %v136 = vmul.f32 %v72, %v72
    %v137 = vmul.f32 %v73, %v73
    %v138 = vmul.f32 %v74, %v74
    %v139 = vmul.f32 %v75, %v75
    %v140 = vmul.f32 %v76, %v76
    %v141 = vmul.f32 %v77, %v77
    %v142 = vmul.f32 %v78, %v78
    %v143 = vmul.f32 %v79, %v79
    %v144 = vmul.f32 %v80, %v80
    %v145 = vmul.f32 %v81, %v81
    %v146 = vmul.f32 %v82, %v82
    %v147 = vmul.f32 %v83, %v83
    %v148 = vmul.f32 %v84, %v84
    %v149 = vmul.f32 %v85, %v85
    %v150 = vmul.f32 %v86, %v86
    %151 = vadd.xlane.f32.xlu0 %v87
    %v152 = vpop.xlane.xlu0 %151
    %153 = vadd.xlane.f32.xlu0 %v88
    %v154 = vpop.xlane.xlu0 %153
    %155 = vadd.xlane.f32.xlu0 %v89
    %v156 = vpop.xlane.xlu0 %155
    %157 = vadd.xlane.f32.xlu0 %v90
    %v158 = vpop.xlane.xlu0 %157
    %159 = vadd.xlane.f32.xlu0 %v91
    %v160 = vpop.xlane.xlu0 %159
    %161 = vadd.xlane.f32.xlu0 %v92
    %v162 = vpop.xlane.xlu0 %161
    %163 = vadd.xlane.f32.xlu0 %v93
    %v164 = vpop.xlane.xlu0 %163
    %165 = vadd.xlane.f32.xlu0 %v94
    %v166 = vpop.xlane.xlu0 %165
    %167 = vadd.xlane.f32.xlu0 %v95
    %v168 = vpop.xlane.xlu0 %167
    %169 = vadd.xlane.f32.xlu0 %v96
    %v170 = vpop.xlane.xlu0 %169
    %171 = vadd.xlane.f32.xlu0 %v97
    %v172 = vpop.xlane.xlu0 %171
    %173 = vadd.xlane.f32.xlu0 %v98
    %v174 = vpop.xlane.xlu0 %173
    %175 = vadd.xlane.f32.xlu0 %v99
    %v176 = vpop.xlane.xlu0 %175
    %177 = vadd.xlane.f32.xlu0 %v100
    %v178 = vpop.xlane.xlu0 %177
    %179 = vadd.xlane.f32.xlu0 %v101
    %v180 = vpop.xlane.xlu0 %179
    %181 = vadd.xlane.f32.xlu0 %v102
    %v182 = vpop.xlane.xlu0 %181
    %183 = vadd.xlane.f32.xlu0 %v103
    %v184 = vpop.xlane.xlu0 %183
    %185 = vadd.xlane.f32.xlu0 %v104
    %v186 = vpop.xlane.xlu0 %185
    %187 = vadd.xlane.f32.xlu0 %v105
    %v188 = vpop.xlane.xlu0 %187
    %189 = vadd.xlane.f32.xlu0 %v106
    %v190 = vpop.xlane.xlu0 %189
    %191 = vadd.xlane.f32.xlu0 %v107
    %v192 = vpop.xlane.xlu0 %191
    %193 = vadd.xlane.f32.xlu0 %v108
    %v194 = vpop.xlane.xlu0 %193
    %195 = vadd.xlane.f32.xlu0 %v109
    %v196 = vpop.xlane.xlu0 %195
    %197 = vadd.xlane.f32.xlu0 %v110
    %v198 = vpop.xlane.xlu0 %197
    %199 = vadd.xlane.f32.xlu0 %v111
    %v200 = vpop.xlane.xlu0 %199
    %201 = vadd.xlane.f32.xlu0 %v112
    %v202 = vpop.xlane.xlu0 %201
    %203 = vadd.xlane.f32.xlu0 %v113
    %v204 = vpop.xlane.xlu0 %203
    %205 = vadd.xlane.f32.xlu0 %v114
    %v206 = vpop.xlane.xlu0 %205
    %207 = vadd.xlane.f32.xlu0 %v115
    %v208 = vpop.xlane.xlu0 %207
    %209 = vadd.xlane.f32.xlu0 %v116
    %v210 = vpop.xlane.xlu0 %209
    %211 = vadd.xlane.f32.xlu0 %v117
    %v212 = vpop.xlane.xlu0 %211
    %213 = vadd.xlane.f32.xlu0 %v118
    %v214 = vpop.xlane.xlu0 %213
    %215 = vadd.xlane.f32.xlu0 %v119
    %v216 = vpop.xlane.xlu0 %215
    %217 = vadd.xlane.f32.xlu0 %v120
    %v218 = vpop.xlane.xlu0 %217
    %219 = vadd.xlane.f32.xlu0 %v121
    %v220 = vpop.xlane.xlu0 %219
    %221 = vadd.xlane.f32.xlu0 %v122
    %v222 = vpop.xlane.xlu0 %221
    %223 = vadd.xlane.f32.xlu0 %v123
    %v224 = vpop.xlane.xlu0 %223
    %225 = vadd.xlane.f32.xlu0 %v124
    %v226 = vpop.xlane.xlu0 %225
    %227 = vadd.xlane.f32.xlu0 %v125
    %v228 = vpop.xlane.xlu0 %227
    %229 = vadd.xlane.f32.xlu0 %v126
    %v230 = vpop.xlane.xlu0 %229
    %231 = vadd.xlane.f32.xlu0 %v127
    %v232 = vpop.xlane.xlu0 %231
    %233 = vadd.xlane.f32.xlu0 %v128
    %v234 = vpop.xlane.xlu0 %233
    %235 = vadd.xlane.f32.xlu0 %v129
    %v236 = vpop.xlane.xlu0 %235
    %237 = vadd.xlane.f32.xlu0 %v130
    %v238 = vpop.xlane.xlu0 %237
    %239 = vadd.xlane.f32.xlu0 %v131
    %v240 = vpop.xlane.xlu0 %239
    %241 = vadd.xlane.f32.xlu0 %v132
    %v242 = vpop.xlane.xlu0 %241
    %243 = vadd.xlane.f32.xlu0 %v133
    %v244 = vpop.xlane.xlu0 %243
    %245 = vadd.xlane.f32.xlu0 %v134
    %v246 = vpop.xlane.xlu0 %245
    %247 = vadd.xlane.f32.xlu0 %v135
    %v248 = vpop.xlane.xlu0 %247
    %249 = vadd.xlane.f32.xlu0 %v136
    %v250 = vpop.xlane.xlu0 %249
    %251 = vadd.xlane.f32.xlu0 %v137
    %v252 = vpop.xlane.xlu0 %251
    %253 = vadd.xlane.f32.xlu0 %v138
    %v254 = vpop.xlane.xlu0 %253
    %255 = vadd.xlane.f32.xlu0 %v139
    %v256 = vpop.xlane.xlu0 %255
    %257 = vadd.xlane.f32.xlu0 %v140
    %v258 = vpop.xlane.xlu0 %257
    %259 = vadd.xlane.f32.xlu0 %v141
    %v260 = vpop.xlane.xlu0 %259
    %261 = vadd.xlane.f32.xlu0 %v142
    %v262 = vpop.xlane.xlu0 %261
    %263 = vadd.xlane.f32.xlu0 %v143
    %v264 = vpop.xlane.xlu0 %263
    %265 = vadd.xlane.f32.xlu0 %v144
    %v266 = vpop.xlane.xlu0 %265
    %267 = vadd.xlane.f32.xlu0 %v145
    %v268 = vpop.xlane.xlu0 %267
    %269 = vadd.xlane.f32.xlu0 %v146
    %v270 = vpop.xlane.xlu0 %269
    %271 = vadd.xlane.f32.xlu0 %v147
    %v272 = vpop.xlane.xlu0 %271
    %273 = vadd.xlane.f32.xlu0 %v148
    %v274 = vpop.xlane.xlu0 %273
    %275 = vadd.xlane.f32.xlu0 %v149
    %v276 = vpop.xlane.xlu0 %275
    %277 = vadd.xlane.f32.xlu0 %v150
    %v278 = vpop.xlane.xlu0 %277
    %v279 = vadd.f32 %v152, 1e-12
    %v280 = vadd.f32 %v154, 1e-12
    %v281 = vadd.f32 %v156, 1e-12
    %v282 = vadd.f32 %v158, 1e-12
    %v283 = vadd.f32 %v160, 1e-12
    %v284 = vadd.f32 %v162, 1e-12
    %v285 = vadd.f32 %v164, 1e-12
    %v286 = vadd.f32 %v166, 1e-12
    %v287 = vadd.f32 %v168, 1e-12
    %v288 = vadd.f32 %v170, 1e-12
    %v289 = vadd.f32 %v172, 1e-12
    %v290 = vadd.f32 %v174, 1e-12
    %v291 = vadd.f32 %v176, 1e-12
    %v292 = vadd.f32 %v178, 1e-12
    %v293 = vadd.f32 %v180, 1e-12
    %v294 = vadd.f32 %v182, 1e-12
    %v295 = vadd.f32 %v184, 1e-12
    %v296 = vadd.f32 %v186, 1e-12
    %v297 = vadd.f32 %v188, 1e-12
    %v298 = vadd.f32 %v190, 1e-12
    %v299 = vadd.f32 %v192, 1e-12
    %v300 = vadd.f32 %v194, 1e-12
    %v301 = vadd.f32 %v196, 1e-12
    %v302 = vadd.f32 %v198, 1e-12
    %v303 = vadd.f32 %v200, 1e-12
    %v304 = vadd.f32 %v202, 1e-12
    %v305 = vadd.f32 %v204, 1e-12
    %v306 = vadd.f32 %v206, 1e-12
    %v307 = vadd.f32 %v208, 1e-12
    %v308 = vadd.f32 %v210, 1e-12
    %v309 = vadd.f32 %v212, 1e-12
    %v310 = vadd.f32 %v214, 1e-12
    %v311 = vadd.f32 %v216, 1e-12
    %v312 = vadd.f32 %v218, 1e-12
    %v313 = vadd.f32 %v220, 1e-12
    %v314 = vadd.f32 %v222, 1e-12
    %v315 = vadd.f32 %v224, 1e-12
    %v316 = vadd.f32 %v226, 1e-12
    %v317 = vadd.f32 %v228, 1e-12
    %v318 = vadd.f32 %v230, 1e-12
    %v319 = vadd.f32 %v232, 1e-12
    %v320 = vadd.f32 %v234, 1e-12
    %v321 = vadd.f32 %v236, 1e-12
    %v322 = vadd.f32 %v238, 1e-12
    %v323 = vadd.f32 %v240, 1e-12
    %v324 = vadd.f32 %v242, 1e-12
    %v325 = vadd.f32 %v244, 1e-12
    %v326 = vadd.f32 %v246, 1e-12
    %v327 = vadd.f32 %v248, 1e-12
    %v328 = vadd.f32 %v250, 1e-12
    %v329 = vadd.f32 %v252, 1e-12
    %v330 = vadd.f32 %v254, 1e-12
    %v331 = vadd.f32 %v256, 1e-12
    %v332 = vadd.f32 %v258, 1e-12
    %v333 = vadd.f32 %v260, 1e-12
    %v334 = vadd.f32 %v262, 1e-12
    %v335 = vadd.f32 %v264, 1e-12
    %v336 = vadd.f32 %v266, 1e-12
    %v337 = vadd.f32 %v268, 1e-12
    %v338 = vadd.f32 %v270, 1e-12
    %v339 = vadd.f32 %v272, 1e-12
    %v340 = vadd.f32 %v274, 1e-12
    %v341 = vadd.f32 %v276, 1e-12
    %v342 = vadd.f32 %v278, 1e-12
    %v343 = vrsqrt.pop %v279
    %v344 = vrsqrt.pop %v280
    %v345 = vrsqrt.pop %v281
    %v346 = vrsqrt.pop %v282
    %v347 = vrsqrt.pop %v283
    %v348 = vrsqrt.pop %v284
    %v349 = vrsqrt.pop %v285
    %v350 = vrsqrt.pop %v286
    %v351 = vrsqrt.pop %v287
    %v352 = vrsqrt.pop %v288
    %v353 = vrsqrt.pop %v289
    %v354 = vrsqrt.pop %v290
    %v355 = vrsqrt.pop %v291
    %v356 = vrsqrt.pop %v292
    %v357 = vrsqrt.pop %v293
    %v358 = vrsqrt.pop %v294
    %v359 = vrsqrt.pop %v295
    %v360 = vrsqrt.pop %v296
    %v361 = vrsqrt.pop %v297
    %v362 = vrsqrt.pop %v298
    %v363 = vrsqrt.pop %v299
    %v364 = vrsqrt.pop %v300
    %v365 = vrsqrt.pop %v301
    %v366 = vrsqrt.pop %v302
    %v367 = vrsqrt.pop %v303
    %v368 = vrsqrt.pop %v304
    %v369 = vrsqrt.pop %v305
    %v370 = vrsqrt.pop %v306
    %v371 = vrsqrt.pop %v307
    %v372 = vrsqrt.pop %v308
    %v373 = vrsqrt.pop %v309
    %v374 = vrsqrt.pop %v310
    %v375 = vrsqrt.pop %v311
    %v376 = vrsqrt.pop %v312
    %v377 = vrsqrt.pop %v313
    %v378 = vrsqrt.pop %v314
    %v379 = vrsqrt.pop %v315
    %v380 = vrsqrt.pop %v316
    %v381 = vrsqrt.pop %v317
    %v382 = vrsqrt.pop %v318
    %v383 = vrsqrt.pop %v319
    %v384 = vrsqrt.pop %v320
    %v385 = vrsqrt.pop %v321
    %v386 = vrsqrt.pop %v322
    %v387 = vrsqrt.pop %v323
    %v388 = vrsqrt.pop %v324
    %v389 = vrsqrt.pop %v325
    %v390 = vrsqrt.pop %v326
    %v391 = vrsqrt.pop %v327
    %v392 = vrsqrt.pop %v328
    %v393 = vrsqrt.pop %v329
    %v394 = vrsqrt.pop %v330
    %v395 = vrsqrt.pop %v331
    %v396 = vrsqrt.pop %v332
    %v397 = vrsqrt.pop %v333
    %v398 = vrsqrt.pop %v334
    %v399 = vrsqrt.pop %v335
    %v400 = vrsqrt.pop %v336
    %v401 = vrsqrt.pop %v337
    %v402 = vrsqrt.pop %v338
    %v403 = vrsqrt.pop %v339
    %v404 = vrsqrt.pop %v340
    %v405 = vrsqrt.pop %v341
    %v406 = vrsqrt.pop %v342
    %v407 = vmul.f32 %v23, %v343
    %v408 = vmul.f32 %v24, %v344
    %v409 = vmul.f32 %v25, %v345
    %v410 = vmul.f32 %v26, %v346
    %v411 = vmul.f32 %v27, %v347
    %v412 = vmul.f32 %v28, %v348
    %v413 = vmul.f32 %v29, %v349
    %v414 = vmul.f32 %v30, %v350
    %v415 = vmul.f32 %v31, %v351
    %v416 = vmul.f32 %v32, %v352
    %v417 = vmul.f32 %v33, %v353
    %v418 = vmul.f32 %v34, %v354
    %v419 = vmul.f32 %v35, %v355
    %v420 = vmul.f32 %v36, %v356
    %v421 = vmul.f32 %v37, %v357
    %v422 = vmul.f32 %v38, %v358
    %v423 = vmul.f32 %v39, %v359
    %v424 = vmul.f32 %v40, %v360
    %v425 = vmul.f32 %v41, %v361
    %v426 = vmul.f32 %v42, %v362
    %v427 = vmul.f32 %v43, %v363
    %v428 = vmul.f32 %v44, %v364
    %v429 = vmul.f32 %v45, %v365
    %v430 = vmul.f32 %v46, %v366
    %v431 = vmul.f32 %v47, %v367
    %v432 = vmul.f32 %v48, %v368
    %v433 = vmul.f32 %v49, %v369
    %v434 = vmul.f32 %v50, %v370
    %v435 = vmul.f32 %v51, %v371
    %v436 = vmul.f32 %v52, %v372
    %v437 = vmul.f32 %v53, %v373
    %v438 = vmul.f32 %v54, %v374
    %v439 = vmul.f32 %v55, %v375
    %v440 = vmul.f32 %v56, %v376
    %v441 = vmul.f32 %v57, %v377
    %v442 = vmul.f32 %v58, %v378
    %v443 = vmul.f32 %v59, %v379
    %v444 = vmul.f32 %v60, %v380
    %v445 = vmul.f32 %v61, %v381
    %v446 = vmul.f32 %v62, %v382
    %v447 = vmul.f32 %v63, %v383
    %v448 = vmul.f32 %v64, %v384
    %v449 = vmul.f32 %v65, %v385
    %v450 = vmul.f32 %v66, %v386
    %v451 = vmul.f32 %v67, %v387
    %v452 = vmul.f32 %v68, %v388
    %v453 = vmul.f32 %v69, %v389
    %v454 = vmul.f32 %v70, %v390
    %v455 = vmul.f32 %v71, %v391
    %v456 = vmul.f32 %v72, %v392
    %v457 = vmul.f32 %v73, %v393
    %v458 = vmul.f32 %v74, %v394
    %v459 = vmul.f32 %v75, %v395
    %v460 = vmul.f32 %v76, %v396
    %v461 = vmul.f32 %v77, %v397
    %v462 = vmul.f32 %v78, %v398
    %v463 = vmul.f32 %v79, %v399
    %v464 = vmul.f32 %v80, %v400
    %v465 = vmul.f32 %v81, %v401
    %v466 = vmul.f32 %v82, %v402
    %v467 = vmul.f32 %v83, %v403
    %v468 = vmul.f32 %v84, %v404
    %v469 = vmul.f32 %v85, %v405
    %v470 = vmul.f32 %v86, %v406
    %v471 = vpack.c.bf16 %v408, %v407
    %v472 = vpack.c.bf16 %v410, %v409
    %v473 = vpack.c.bf16 %v412, %v411
    %v474 = vpack.c.bf16 %v414, %v413
    %v475 = vpack.c.bf16 %v416, %v415
    %v476 = vpack.c.bf16 %v418, %v417
    %v477 = vpack.c.bf16 %v420, %v419
    %v478 = vpack.c.bf16 %v422, %v421
    %v479 = vpack.c.bf16 %v424, %v423
    %v480 = vpack.c.bf16 %v426, %v425
    %v481 = vpack.c.bf16 %v428, %v427
    %v482 = vpack.c.bf16 %v430, %v429
    %v483 = vpack.c.bf16 %v432, %v431
    %v484 = vpack.c.bf16 %v434, %v433
    %v485 = vpack.c.bf16 %v436, %v435
    %v486 = vpack.c.bf16 %v438, %v437
    %v487 = vpack.c.bf16 %v440, %v439
    %v488 = vpack.c.bf16 %v442, %v441
    %v489 = vpack.c.bf16 %v444, %v443
    %v490 = vpack.c.bf16 %v446, %v445
    %v491 = vpack.c.bf16 %v448, %v447
    %v492 = vpack.c.bf16 %v450, %v449
    %v493 = vpack.c.bf16 %v452, %v451
    %v494 = vpack.c.bf16 %v454, %v453
    %v495 = vpack.c.bf16 %v456, %v455
    %v496 = vpack.c.bf16 %v458, %v457
    %v497 = vpack.c.bf16 %v460, %v459
    %v498 = vpack.c.bf16 %v462, %v461
    %v499 = vpack.c.bf16 %v464, %v463
    %v500 = vpack.c.bf16 %v466, %v465
    %v501 = vpack.c.bf16 %v468, %v467
    %v502 = vpack.c.bf16 %v470, %v469
    %v535 = vunpack.c.l.b16 %v471
    %v536 = vunpack.c.h.b16 %v471
    %v537 = vunpack.c.l.b16 %v472
    %v538 = vunpack.c.h.b16 %v472
    %v539 = vunpack.c.l.b16 %v473
    %v540 = vunpack.c.h.b16 %v473
    %v541 = vunpack.c.l.b16 %v474
    %v542 = vunpack.c.h.b16 %v474
    %v543 = vunpack.c.l.b16 %v475
    %v544 = vunpack.c.h.b16 %v475
    %v545 = vunpack.c.l.b16 %v476
    %v546 = vunpack.c.h.b16 %v476
    %v547 = vunpack.c.l.b16 %v477
    %v548 = vunpack.c.h.b16 %v477
    %v549 = vunpack.c.l.b16 %v478
    %v550 = vunpack.c.h.b16 %v478
    %v551 = vunpack.c.l.b16 %v479
    %v552 = vunpack.c.h.b16 %v479
    %v553 = vunpack.c.l.b16 %v480
    %v554 = vunpack.c.h.b16 %v480
    %v555 = vunpack.c.l.b16 %v481
    %v556 = vunpack.c.h.b16 %v481
    %v557 = vunpack.c.l.b16 %v482
    %v558 = vunpack.c.h.b16 %v482
    %v559 = vunpack.c.l.b16 %v483
    %v560 = vunpack.c.h.b16 %v483
    %v561 = vunpack.c.l.b16 %v484
    %v562 = vunpack.c.h.b16 %v484
    %v563 = vunpack.c.l.b16 %v485
    %v564 = vunpack.c.h.b16 %v485
    %v565 = vunpack.c.l.b16 %v486
    %v566 = vunpack.c.h.b16 %v486
    %v567 = vunpack.c.l.b16 %v487
    %v568 = vunpack.c.h.b16 %v487
    %v569 = vunpack.c.l.b16 %v488
    %v570 = vunpack.c.h.b16 %v488
    %v571 = vunpack.c.l.b16 %v489
    %v572 = vunpack.c.h.b16 %v489
    %v573 = vunpack.c.l.b16 %v490
    %v574 = vunpack.c.h.b16 %v490
    %v575 = vunpack.c.l.b16 %v491
    %v576 = vunpack.c.h.b16 %v491
    %v577 = vunpack.c.l.b16 %v492
    %v578 = vunpack.c.h.b16 %v492
    %v579 = vunpack.c.l.b16 %v493
    %v580 = vunpack.c.h.b16 %v493
    %v581 = vunpack.c.l.b16 %v494
    %v582 = vunpack.c.h.b16 %v494
    %v583 = vunpack.c.l.b16 %v495
    %v584 = vunpack.c.h.b16 %v495
    %v585 = vunpack.c.l.b16 %v496
    %v586 = vunpack.c.h.b16 %v496
    %v587 = vunpack.c.l.b16 %v497
    %v588 = vunpack.c.h.b16 %v497
    %v589 = vunpack.c.l.b16 %v498
    %v590 = vunpack.c.h.b16 %v498
    %v591 = vunpack.c.l.b16 %v499
    %v592 = vunpack.c.h.b16 %v499
    %v593 = vunpack.c.l.b16 %v500
    %v594 = vunpack.c.h.b16 %v500
    %v595 = vunpack.c.l.b16 %v501
    %v596 = vunpack.c.h.b16 %v501
    %v597 = vunpack.c.l.b16 %v502
    %v598 = vunpack.c.h.b16 %v502
    %v599 = vpack.c.b16 %v535, %v535
    %v600 = vpack.c.b16 %v536, %v536
    %v601 = vpack.c.b16 %v537, %v537
    %v602 = vpack.c.b16 %v538, %v538
    %v603 = vpack.c.b16 %v539, %v539
    %v604 = vpack.c.b16 %v540, %v540
    %v605 = vpack.c.b16 %v541, %v541
    %v606 = vpack.c.b16 %v542, %v542
    %v607 = vpack.c.b16 %v543, %v543
    %v608 = vpack.c.b16 %v544, %v544
    %v609 = vpack.c.b16 %v545, %v545
    %v610 = vpack.c.b16 %v546, %v546
    %v611 = vpack.c.b16 %v547, %v547
    %v612 = vpack.c.b16 %v548, %v548
    %v613 = vpack.c.b16 %v549, %v549
    %v614 = vpack.c.b16 %v550, %v550
    %v615 = vpack.c.b16 %v551, %v551
    %v616 = vpack.c.b16 %v552, %v552
    %v617 = vpack.c.b16 %v553, %v553
    %v618 = vpack.c.b16 %v554, %v554
    %v619 = vpack.c.b16 %v555, %v555
    %v620 = vpack.c.b16 %v556, %v556
    %v621 = vpack.c.b16 %v557, %v557
    %v622 = vpack.c.b16 %v558, %v558
    %v623 = vpack.c.b16 %v559, %v559
    %v624 = vpack.c.b16 %v560, %v560
    %v625 = vpack.c.b16 %v561, %v561
    %v626 = vpack.c.b16 %v562, %v562
    %v627 = vpack.c.b16 %v563, %v563
    %v628 = vpack.c.b16 %v564, %v564
    %v629 = vpack.c.b16 %v565, %v565
    %v630 = vpack.c.b16 %v566, %v566
    %v631 = vpack.c.b16 %v567, %v567
    %v632 = vpack.c.b16 %v568, %v568
    %v633 = vpack.c.b16 %v569, %v569
    %v634 = vpack.c.b16 %v570, %v570
    %v635 = vpack.c.b16 %v571, %v571
    %v636 = vpack.c.b16 %v572, %v572
    %v637 = vpack.c.b16 %v573, %v573
    %v638 = vpack.c.b16 %v574, %v574
    %v639 = vpack.c.b16 %v575, %v575
    %v640 = vpack.c.b16 %v576, %v576
    %v641 = vpack.c.b16 %v577, %v577
    %v642 = vpack.c.b16 %v578, %v578
    %v643 = vpack.c.b16 %v579, %v579
    %v644 = vpack.c.b16 %v580, %v580
    %v645 = vpack.c.b16 %v581, %v581
    %v646 = vpack.c.b16 %v582, %v582
    %v647 = vpack.c.b16 %v583, %v583
    %v648 = vpack.c.b16 %v584, %v584
    %v649 = vpack.c.b16 %v585, %v585
    %v650 = vpack.c.b16 %v586, %v586
    %v651 = vpack.c.b16 %v587, %v587
    %v652 = vpack.c.b16 %v588, %v588
    %v653 = vpack.c.b16 %v589, %v589
    %v654 = vpack.c.b16 %v590, %v590
    %v655 = vpack.c.b16 %v591, %v591
    %v656 = vpack.c.b16 %v592, %v592
    %v657 = vpack.c.b16 %v593, %v593
    %v658 = vpack.c.b16 %v594, %v594
    %v659 = vpack.c.b16 %v595, %v595
    %v660 = vpack.c.b16 %v596, %v596
    %v661 = vpack.c.b16 %v597, %v597
    %v662 = vpack.c.b16 %v598, %v598
    %727 = vst [vmem:[#allocation5] sm:$0xf] %v599
    %728 = vst [vmem:[#allocation5 + $0x4] sm:$0xf] %v600
    %729 = vst [vmem:[#allocation5 + $0x8] sm:$0xf] %v601
    %730 = vst [vmem:[#allocation5 + $0xc] sm:$0xf] %v602
    %731 = vst [vmem:[#allocation5 + $0x10] sm:$0xf] %v603
    %732 = vst [vmem:[#allocation5 + $0x14] sm:$0xf] %v604
    %733 = vst [vmem:[#allocation5 + $0x18] sm:$0xf] %v605
    %734 = vst [vmem:[#allocation5 + $0x1c] sm:$0xf] %v606
    %735 = vst [vmem:[#allocation5 + $0x20] sm:$0xf] %v607
    %736 = vst [vmem:[#allocation5 + $0x24] sm:$0xf] %v608
    %737 = vst [vmem:[#allocation5 + $0x28] sm:$0xf] %v609
    %738 = vst [vmem:[#allocation5 + $0x2c] sm:$0xf] %v610
    %739 = vst [vmem:[#allocation5 + $0x30] sm:$0xf] %v611
    %740 = vst [vmem:[#allocation5 + $0x34] sm:$0xf] %v612
    %741 = vst [vmem:[#allocation5 + $0x38] sm:$0xf] %v613
    %742 = vst [vmem:[#allocation5 + $0x3c] sm:$0xf] %v614
    %743 = vst [vmem:[#allocation5 + $0x40] sm:$0xf] %v615
    %744 = vst [vmem:[#allocation5 + $0x44] sm:$0xf] %v616
    %745 = vst [vmem:[#allocation5 + $0x48] sm:$0xf] %v617
    %746 = vst [vmem:[#allocation5 + $0x4c] sm:$0xf] %v618
    %747 = vst [vmem:[#allocation5 + $0x50] sm:$0xf] %v619
    %748 = vst [vmem:[#allocation5 + $0x54] sm:$0xf] %v620
    %749 = vst [vmem:[#allocation5 + $0x58] sm:$0xf] %v621
    %750 = vst [vmem:[#allocation5 + $0x5c] sm:$0xf] %v622
    %751 = vst [vmem:[#allocation5 + $0x60] sm:$0xf] %v623
    %752 = vst [vmem:[#allocation5 + $0x64] sm:$0xf] %v624
    %753 = vst [vmem:[#allocation5 + $0x68] sm:$0xf] %v625
    %754 = vst [vmem:[#allocation5 + $0x6c] sm:$0xf] %v626
    %755 = vst [vmem:[#allocation5 + $0x70] sm:$0xf] %v627
    %756 = vst [vmem:[#allocation5 + $0x74] sm:$0xf] %v628
    %757 = vst [vmem:[#allocation5 + $0x78] sm:$0xf] %v629
    %758 = vst [vmem:[#allocation5 + $0x7c] sm:$0xf] %v630
    %759 = vst [vmem:[#allocation5 + $0x80] sm:$0xf] %v631
    %760 = vst [vmem:[#allocation5 + $0x84] sm:$0xf] %v632
    %761 = vst [vmem:[#allocation5 + $0x88] sm:$0xf] %v633
    %762 = vst [vmem:[#allocation5 + $0x8c] sm:$0xf] %v634
    %763 = vst [vmem:[#allocation5 + $0x90] sm:$0xf] %v635
    %764 = vst [vmem:[#allocation5 + $0x94] sm:$0xf] %v636
    %765 = vst [vmem:[#allocation5 + $0x98] sm:$0xf] %v637
    %766 = vst [vmem:[#allocation5 + $0x9c] sm:$0xf] %v638
    %767 = vst [vmem:[#allocation5 + $0xa0] sm:$0xf] %v639
    %768 = vst [vmem:[#allocation5 + $0xa4] sm:$0xf] %v640
    %769 = vst [vmem:[#allocation5 + $0xa8] sm:$0xf] %v641
    %770 = vst [vmem:[#allocation5 + $0xac] sm:$0xf] %v642
    %771 = vst [vmem:[#allocation5 + $0xb0] sm:$0xf] %v643
    %772 = vst [vmem:[#allocation5 + $0xb4] sm:$0xf] %v644
    %773 = vst [vmem:[#allocation5 + $0xb8] sm:$0xf] %v645
    %774 = vst [vmem:[#allocation5 + $0xbc] sm:$0xf] %v646
    %775 = vst [vmem:[#allocation5 + $0xc0] sm:$0xf] %v647
    %776 = vst [vmem:[#allocation5 + $0xc4] sm:$0xf] %v648
    %777 = vst [vmem:[#allocation5 + $0xc8] sm:$0xf] %v649
    %778 = vst [vmem:[#allocation5 + $0xcc] sm:$0xf] %v650
    %779 = vst [vmem:[#allocation5 + $0xd0] sm:$0xf] %v651
    %780 = vst [vmem:[#allocation5 + $0xd4] sm:$0xf] %v652
    %781 = vst [vmem:[#allocation5 + $0xd8] sm:$0xf] %v653
    %782 = vst [vmem:[#allocation5 + $0xdc] sm:$0xf] %v654
    %783 = vst [vmem:[#allocation5 + $0xe0] sm:$0xf] %v655
    %784 = vst [vmem:[#allocation5 + $0xe4] sm:$0xf] %v656
    %785 = vst [vmem:[#allocation5 + $0xe8] sm:$0xf] %v657
    %786 = vst [vmem:[#allocation5 + $0xec] sm:$0xf] %v658
    %787 = vst [vmem:[#allocation5 + $0xf0] sm:$0xf] %v659
    %788 = vst [vmem:[#allocation5 + $0xf4] sm:$0xf] %v660
    %789 = vst [vmem:[#allocation5 + $0xf8] sm:$0xf] %v661
    %790 = vst [vmem:[#allocation5 + $0xfc] sm:$0xf] %v662
    // Predicated region
    $region10: #{tpu_custom_call.1} parent=1 // pred_check
      _
    $region11: #{tpu_custom_call.1} parent=1 // pred_check_branch
      %792 = sbr.rel (0) target = $region13
    $region12: #{tpu_custom_call.1} parent=1 // pred_region
      %s794 = ssub.s32 4096, 4096
      %795 = vsyncadd [#allocation4], %s794
      %s796 = sshll.u32 [#allocation5], 4
      %s797 = int_to_ptr.vmem [resolvable:$true] %s796
      %802 = dma.vmem_to_hbm [thread:$0]  %s797, 4096, %s1, [#allocation4], 64, 64, 4
    $region13: #{tpu_custom_call.1} parent=1 // pred_fallthru
      _
    // Predicated region
    $region14: #{tpu_custom_call.1} parent=1 // pred_check
      _
    $region15: #{tpu_custom_call.1} parent=1 // pred_check_branch
      %804 = sbr.rel (0) target = $region17
    $region16: #{tpu_custom_call.1} parent=1 // pred_region
      %805 = dma.done [#allocation4], 4096
    $region17: #{tpu_custom_call.1} parent=1 // pred_fallthru
      _
    %806 = vsyncpa [#allocation3], 1
    %807 = vsyncpa [#allocation4], 1

</llo_original>
